<compile_context>
chip_gen: v6e
topology: v6e:2x2x1
jax: 0.10.0
libtpu: 0.0.40
codegen_flags: <defaults>
</compile_context>

<pallas_src>
import functools

import jax
import jax.numpy as jnp
from jax.experimental import pallas as pl
from jax.experimental.pallas import tpu as pltpu


def _dist_loss_kernel(s_ref, t_ref, o_ref,
                      inter_ref, sds_ref, sdt_ref, sss_ref, stt_ref, sst_ref,
                      *, n_samples, n_classes, beta, gamma, eps):
    b = pl.program_id(0)
    j = pl.program_id(1)
    is_first = jnp.logical_and(b == 0, j == 0)
    is_last = jnp.logical_and(b == pl.num_programs(0) - 1,
                              j == pl.num_programs(1) - 1)

    @pl.when(is_first)
    def _init():
        inter_ref[...] = jnp.zeros_like(inter_ref)
        sds_ref[...] = jnp.zeros_like(sds_ref)
        sdt_ref[...] = jnp.zeros_like(sdt_ref)
        sss_ref[...] = jnp.zeros_like(sss_ref)
        stt_ref[...] = jnp.zeros_like(stt_ref)
        sst_ref[...] = jnp.zeros_like(sst_ref)

    # (C, TILE): classes on sublanes, samples lane-dense.
    s = s_ref[0].astype(jnp.float32)
    t = t_ref[0].astype(jnp.float32)

    # Numerically stable softmax over the class (sublane) axis.
    s = jnp.exp(s - jnp.max(s, axis=0, keepdims=True))
    t = jnp.exp(t - jnp.max(t, axis=0, keepdims=True))
    s = s * (1.0 / jnp.sum(s, axis=0, keepdims=True))
    t = t * (1.0 / jnp.sum(t, axis=0, keepdims=True))

    # After softmax every sample's class-mean is exactly 1/C, so center by the
    # constant instead of re-reducing; the same shift is used for the
    # streaming intra-class moments (shift-invariant, better conditioned).
    inv_c = 1.0 / float(n_classes)
    ds = s - inv_c
    dt = t - inv_c
    ds2 = ds * ds
    dt2 = dt * dt
    dsdt = ds * dt

    # ---- inter-class: per-sample Pearson over classes (sublane reduces) ----
    num = jnp.sum(dsdt, axis=0, keepdims=True)               # (1, TILE)
    vs = jnp.sum(ds2, axis=0, keepdims=True)
    vt = jnp.sum(dt2, axis=0, keepdims=True)
    den = jnp.sqrt(vs) * jnp.sqrt(vt) + eps                  # eps as in torch ref
    corr = num * pl.reciprocal(den, approx=True)             # EUP, not VALU divide
    inter_ref[...] += jnp.sum(corr, axis=1, keepdims=True)   # (1, 1) running sum

    # ---- intra-class: streaming per-class shifted moments (lane reduces) ----
    sds_ref[...] += jnp.sum(ds, axis=1, keepdims=True)       # (C, 1)
    sdt_ref[...] += jnp.sum(dt, axis=1, keepdims=True)
    sss_ref[...] += jnp.sum(ds2, axis=1, keepdims=True)
    stt_ref[...] += jnp.sum(dt2, axis=1, keepdims=True)
    sst_ref[...] += jnp.sum(dsdt, axis=1, keepdims=True)

    @pl.when(is_last)
    def _finalize():
        inv_n = 1.0 / float(n_samples)
        sds = sds_ref[...]
        sdt = sdt_ref[...]
        cov = sst_ref[...] - sds * sdt * inv_n
        var_s = jnp.maximum(sss_ref[...] - sds * sds * inv_n, 0.0)
        var_t = jnp.maximum(stt_ref[...] - sdt * sdt * inv_n, 0.0)
        intra_corr = cov / (jnp.sqrt(var_s) * jnp.sqrt(var_t) + eps)    # (C, 1)
        intra_loss = 1.0 - jnp.sum(intra_corr, axis=0, keepdims=True) * inv_c
        inter_loss = 1.0 - inter_ref[...] * inv_n                       # (1, 1)
        o_ref[...] = (beta * inter_loss + gamma * intra_loss).astype(o_ref.dtype)


def _pick_tile(hw, num_classes):
    """Lane-tile size for the sample axis: multiple of 128 or the full extent."""
    c_pad = ((num_classes + 7) // 8) * 8
    # ~1 MiB per (C_pad, TILE) f32 slab keeps 2 inputs x 2 pipeline buffers
    # plus the in-kernel f32 temporaries well inside the scoped-VMEM default
    # on every generation (v5e 16 MiB, v6e/v7x 32 MiB).
    max_tile = (1 << 20) // (c_pad * 4)
    max_tile = min(8192, max(128, (max_tile // 128) * 128))
    if hw <= max_tile:
        return hw, 0                       # single full-width tile per batch
    lo = max(128, ((max_tile // 4) // 128) * 128)
    for t in range(max_tile, lo - 1, -128):
        if hw % t == 0:
            return t, 0                    # even split, no padding needed
    pad = (-hw) % max_tile                 # rare fallback: zero-pad samples;
    return max_tile, pad                   # padded columns contribute exactly 0


def dist_loss(preds_S, preds_T, beta=1.0, gamma=1.0, eps=1e-8):
    """JAX/Pallas equivalent of DISTLoss.forward -> scalar float32 loss."""
    assert preds_S.shape[-2:] == preds_T.shape[-2:]
    assert preds_S.ndim in (2, 4) and preds_S.ndim == preds_T.ndim

    if preds_S.ndim == 4:
        # NCHW -> (B, C, H*W): pure reshape, no HBM transpose round trip.
        bsz, num_classes, hh, ww = preds_S.shape
        s3 = preds_S.reshape(bsz, num_classes, hh * ww)
        t3 = preds_T.reshape(bsz, num_classes, hh * ww)
    else:
        # (N, C) logits: put classes on the second-minor axis, samples on lanes.
        n_rows, num_classes = preds_S.shape
        s3 = preds_S.T.reshape(1, num_classes, n_rows)
        t3 = preds_T.T.reshape(1, num_classes, n_rows)

    batch, num_classes, hw = s3.shape
    n_samples = batch * hw                 # true sample count (pre-padding)

    tile, pad = _pick_tile(hw, num_classes)
    if pad:
        s3 = jnp.pad(s3, ((0, 0), (0, 0), (0, pad)))
        t3 = jnp.pad(t3, ((0, 0), (0, 0), (0, pad)))
    n_tiles = (hw + pad) // tile

    kernel = functools.partial(
        _dist_loss_kernel,
        n_samples=n_samples, n_classes=num_classes,
        beta=float(beta), gamma=float(gamma), eps=float(eps))

    block = pl.BlockSpec((1, num_classes, tile), lambda b, j: (b, 0, j))
    out = pl.pallas_call(
        kernel,
        out_shape=jax.ShapeDtypeStruct((1, 1), jnp.float32),
        grid_spec=pltpu.PrefetchScalarGridSpec(
            num_scalar_prefetch=0,
            grid=(batch, n_tiles),
            in_specs=[block, block],
            out_specs=pl.BlockSpec((1, 1), lambda b, j: (0, 0)),
            scratch_shapes=[
                pltpu.VMEM((1, 1), jnp.float32),             # inter corr sum
                pltpu.VMEM((num_classes, 1), jnp.float32),   # sum ds
                pltpu.VMEM((num_classes, 1), jnp.float32),   # sum dt
                pltpu.VMEM((num_classes, 1), jnp.float32),   # sum ds^2
                pltpu.VMEM((num_classes, 1), jnp.float32),   # sum dt^2
                pltpu.VMEM((num_classes, 1), jnp.float32),   # sum ds*dt
            ]),
        compiler_params=pltpu.CompilerParams(
            # Both grid axes feed one global streaming reduction -> sequential.
            dimension_semantics=("arbitrary", "arbitrary")),
    )(s3, t3)
    return out[0, 0]


def _dist_loss_reference(preds_S, preds_T, beta=1.0, gamma=1.0, eps=1e-8):
    """Pure-JAX mirror of the PyTorch DISTLoss forward (for verification)."""
    c = preds_S.shape[1]
    s = jnp.transpose(preds_S, (0, 3, 2, 1)).reshape(-1, c)
    t = jnp.transpose(preds_T, (0, 3, 2, 1)).reshape(-1, c)
    s = jax.nn.softmax(s, axis=1)
    t = jax.nn.softmax(t, axis=1)

    def pearson(x, y):
        xc = x - x.mean(axis=1, keepdims=True)
        yc = y - y.mean(axis=1, keepdims=True)
        num = (xc * yc).sum(axis=1)
        den = jnp.sqrt((xc * xc).sum(axis=1)) * jnp.sqrt((yc * yc).sum(axis=1)) + eps
        return num / den

    inter = 1.0 - pearson(s, t).mean()
    intra = 1.0 - pearson(s.T, t.T).mean()
    return beta * inter + gamma * intra


if __name__ == "__main__":
    key = jax.random.PRNGKey(0)
    k_s, k_t = jax.random.split(key)

    B, C, H, W = 2, 4, 16, 16  # small NCHW feature maps (DISTLoss forward)
    preds_S = jax.random.normal(k_s, (B, C, H, W), dtype=jnp.float32)
    preds_T = jax.random.normal(k_t, (B, C, H, W), dtype=jnp.float32)

    loss = dist_loss(preds_S, preds_T, beta=1.0, gamma=1.0)
    jax.block_until_ready(loss)

    ref = _dist_loss_reference(preds_S, preds_T, beta=1.0, gamma=1.0)
    if not (abs(float(loss) - float(ref)) <= 5e-3):
        raise AssertionError(f"mismatch: pallas={float(loss)} ref={float(ref)}")
    print("KERNEL_OK")
</pallas_src>

<mosaic_0001>
module attributes {stable_mosaic.version = 11 : i64} {
  func.func @_dist_loss_kernel(%arg0: i32, %arg1: i32, %arg2: memref<1x4x256xf32, #tpu.memory_space<vmem>>, %arg3: memref<1x4x256xf32, #tpu.memory_space<vmem>>, %arg4: memref<1x1xf32, #tpu.memory_space<vmem>>, %arg5: memref<1x1xf32, #tpu.memory_space<vmem>>, %arg6: memref<4x1xf32, #tpu.memory_space<vmem>>, %arg7: memref<4x1xf32, #tpu.memory_space<vmem>>, %arg8: memref<4x1xf32, #tpu.memory_space<vmem>>, %arg9: memref<4x1xf32, #tpu.memory_space<vmem>>, %arg10: memref<4x1xf32, #tpu.memory_space<vmem>>) attributes {dimension_semantics = [#tpu.dimension_semantics<arbitrary>, #tpu.dimension_semantics<arbitrary>], iteration_bounds = array<i64: 2, 1>, scalar_prefetch = 0 : i64, scratch_operands = 6 : i64, tpu.core_type = #tpu.core_type<tc>, window_params = [{transform_indices = @transform_0, window_bounds = array<i64: 1, 4, 256>}, {transform_indices = @transform_1, window_bounds = array<i64: 1, 4, 256>}, {pipeline_mode = #tpu.pipeline_mode<synchronous>, transform_indices = @transform_2, window_bounds = array<i64: 1, 1>}]} {
    %c0_i32 = arith.constant 0 : i32
    %0 = arith.cmpi eq, %arg0, %c0_i32 : i32
    %c0_i32_0 = arith.constant 0 : i32
    %1 = arith.cmpi eq, %arg1, %c0_i32_0 : i32
    %2 = arith.andi %0, %1 : i1
    %c1_i32 = arith.constant 1 : i32
    %3 = arith.cmpi eq, %arg0, %c1_i32 : i32
    %c0_i32_1 = arith.constant 0 : i32
    %4 = arith.cmpi eq, %arg1, %c0_i32_1 : i32
    %5 = arith.andi %3, %4 : i1
    %6 = arith.extui %2 : i1 to i32
    %c0_i32_2 = arith.constant 0 : i32
    %7 = arith.cmpi ne, %6, %c0_i32_2 : i32
    scf.if %7 {
      %cst_50 = arith.constant 0.000000e+00 : f32
      %86 = vector.broadcast %cst_50 : f32 to vector<1x1xf32>
      %c0_51 = arith.constant 0 : index
      %c0_52 = arith.constant 0 : index
      %87 = vector.load %arg5[%c0_51, %c0_52] : memref<1x1xf32, #tpu.memory_space<vmem>>, vector<1x1xf32>
      tpu.vector_store %arg5[%c0_51, %c0_52], %86 {strides = array<i32>} : memref<1x1xf32, #tpu.memory_space<vmem>>, vector<1x1xf32>,
      %cst_53 = arith.constant 0.000000e+00 : f32
      %88 = vector.broadcast %cst_53 : f32 to vector<4x1xf32>
      %c0_54 = arith.constant 0 : index
      %c0_55 = arith.constant 0 : index
      %89 = vector.load %arg6[%c0_54, %c0_55] : memref<4x1xf32, #tpu.memory_space<vmem>>, vector<4x1xf32>
      tpu.vector_store %arg6[%c0_54, %c0_55], %88 {strides = array<i32>} : memref<4x1xf32, #tpu.memory_space<vmem>>, vector<4x1xf32>,
      %cst_56 = arith.constant 0.000000e+00 : f32
      %90 = vector.broadcast %cst_56 : f32 to vector<4x1xf32>
      %c0_57 = arith.constant 0 : index
      %c0_58 = arith.constant 0 : index
      %91 = vector.load %arg7[%c0_57, %c0_58] : memref<4x1xf32, #tpu.memory_space<vmem>>, vector<4x1xf32>
      tpu.vector_store %arg7[%c0_57, %c0_58], %90 {strides = array<i32>} : memref<4x1xf32, #tpu.memory_space<vmem>>, vector<4x1xf32>,
      %cst_59 = arith.constant 0.000000e+00 : f32
      %92 = vector.broadcast %cst_59 : f32 to vector<4x1xf32>
      %c0_60 = arith.constant 0 : index
      %c0_61 = arith.constant 0 : index
      %93 = vector.load %arg8[%c0_60, %c0_61] : memref<4x1xf32, #tpu.memory_space<vmem>>, vector<4x1xf32>
      tpu.vector_store %arg8[%c0_60, %c0_61], %92 {strides = array<i32>} : memref<4x1xf32, #tpu.memory_space<vmem>>, vector<4x1xf32>,
      %cst_62 = arith.constant 0.000000e+00 : f32
      %94 = vector.broadcast %cst_62 : f32 to vector<4x1xf32>
      %c0_63 = arith.constant 0 : index
      %c0_64 = arith.constant 0 : index
      %95 = vector.load %arg9[%c0_63, %c0_64] : memref<4x1xf32, #tpu.memory_space<vmem>>, vector<4x1xf32>
      tpu.vector_store %arg9[%c0_63, %c0_64], %94 {strides = array<i32>} : memref<4x1xf32, #tpu.memory_space<vmem>>, vector<4x1xf32>,
      %cst_65 = arith.constant 0.000000e+00 : f32
      %96 = vector.broadcast %cst_65 : f32 to vector<4x1xf32>
      %c0_66 = arith.constant 0 : index
      %c0_67 = arith.constant 0 : index
      %97 = vector.load %arg10[%c0_66, %c0_67] : memref<4x1xf32, #tpu.memory_space<vmem>>, vector<4x1xf32>
      tpu.vector_store %arg10[%c0_66, %c0_67], %96 {strides = array<i32>} : memref<4x1xf32, #tpu.memory_space<vmem>>, vector<4x1xf32>,
    } else {
    }
    %c0 = arith.constant 0 : index
    %c0_3 = arith.constant 0 : index
    %c0_4 = arith.constant 0 : index
    %8 = vector.load %arg2[%c0, %c0_3, %c0_4] : memref<1x4x256xf32, #tpu.memory_space<vmem>>, vector<1x4x256xf32>
    %9 = vector.shape_cast %8 : vector<1x4x256xf32> to vector<4x256xf32>
    %c0_5 = arith.constant 0 : index
    %c0_6 = arith.constant 0 : index
    %c0_7 = arith.constant 0 : index
    %10 = vector.load %arg3[%c0_5, %c0_6, %c0_7] : memref<1x4x256xf32, #tpu.memory_space<vmem>>, vector<1x4x256xf32>
    %11 = vector.shape_cast %10 : vector<1x4x256xf32> to vector<4x256xf32>
    %cst = arith.constant dense<0xFF800000> : vector<256xf32>
    %12 = vector.multi_reduction <maximumf>, %9, %cst [0] : vector<4x256xf32> to vector<256xf32>
    %13 = vector.shape_cast %12 : vector<256xf32> to vector<1x256xf32>
    %14 = vector.broadcast %13 : vector<1x256xf32> to vector<4x256xf32>
    %15 = arith.subf %9, %14 : vector<4x256xf32>
    %16 = math.exp %15 : vector<4x256xf32>
    %cst_8 = arith.constant dense<0xFF800000> : vector<256xf32>
    %17 = vector.multi_reduction <maximumf>, %11, %cst_8 [0] : vector<4x256xf32> to vector<256xf32>
    %18 = vector.shape_cast %17 : vector<256xf32> to vector<1x256xf32>
    %19 = vector.broadcast %18 : vector<1x256xf32> to vector<4x256xf32>
    %20 = arith.subf %11, %19 : vector<4x256xf32>
    %21 = math.exp %20 : vector<4x256xf32>
    %cst_9 = arith.constant dense<0.000000e+00> : vector<256xf32>
    %22 = vector.multi_reduction <add>, %16, %cst_9 [0] : vector<4x256xf32> to vector<256xf32>
    %23 = vector.shape_cast %22 : vector<256xf32> to vector<1x256xf32>
    %cst_10 = arith.constant 1.000000e+00 : f32
    %24 = vector.broadcast %cst_10 : f32 to vector<1x256xf32>
    %25 = arith.divf %24, %23 : vector<1x256xf32>
    %26 = vector.broadcast %25 : vector<1x256xf32> to vector<4x256xf32>
    %27 = arith.mulf %16, %26 : vector<4x256xf32>
    %cst_11 = arith.constant dense<0.000000e+00> : vector<256xf32>
    %28 = vector.multi_reduction <add>, %21, %cst_11 [0] : vector<4x256xf32> to vector<256xf32>
    %29 = vector.shape_cast %28 : vector<256xf32> to vector<1x256xf32>
    %cst_12 = arith.constant 1.000000e+00 : f32
    %30 = vector.broadcast %cst_12 : f32 to vector<1x256xf32>
    %31 = arith.divf %30, %29 : vector<1x256xf32>
    %32 = vector.broadcast %31 : vector<1x256xf32> to vector<4x256xf32>
    %33 = arith.mulf %21, %32 : vector<4x256xf32>
    %cst_13 = arith.constant 2.500000e-01 : f32
    %34 = vector.broadcast %cst_13 : f32 to vector<4x256xf32>
    %35 = arith.subf %27, %34 : vector<4x256xf32>
    %cst_14 = arith.constant 2.500000e-01 : f32
    %36 = vector.broadcast %cst_14 : f32 to vector<4x256xf32>
    %37 = arith.subf %33, %36 : vector<4x256xf32>
    %38 = arith.mulf %35, %35 : vector<4x256xf32>
    %39 = arith.mulf %37, %37 : vector<4x256xf32>
    %40 = arith.mulf %35, %37 : vector<4x256xf32>
    %cst_15 = arith.constant dense<0.000000e+00> : vector<256xf32>
    %41 = vector.multi_reduction <add>, %40, %cst_15 [0] : vector<4x256xf32> to vector<256xf32>
    %42 = vector.shape_cast %41 : vector<256xf32> to vector<1x256xf32>
    %cst_16 = arith.constant dense<0.000000e+00> : vector<256xf32>
    %43 = vector.multi_reduction <add>, %38, %cst_16 [0] : vector<4x256xf32> to vector<256xf32>
    %44 = vector.shape_cast %43 : vector<256xf32> to vector<1x256xf32>
    %cst_17 = arith.constant dense<0.000000e+00> : vector<256xf32>
    %45 = vector.multi_reduction <add>, %39, %cst_17 [0] : vector<4x256xf32> to vector<256xf32>
    %46 = vector.shape_cast %45 : vector<256xf32> to vector<1x256xf32>
    %47 = math.sqrt %44 : vector<1x256xf32>
    %48 = math.sqrt %46 : vector<1x256xf32>
    %49 = arith.mulf %47, %48 : vector<1x256xf32>
    %cst_18 = arith.constant 9.99999993E-9 : f32
    %50 = vector.broadcast %cst_18 : f32 to vector<1x256xf32>
    %51 = arith.addf %49, %50 : vector<1x256xf32>
    %52 = tpu.reciprocal %51 {approx = true} : vector<1x256xf32> -> vector<1x256xf32>
    %53 = arith.mulf %42, %52 : vector<1x256xf32>
    %c0_19 = arith.constant 0 : index
    %c0_20 = arith.constant 0 : index
    %54 = vector.load %arg5[%c0_19, %c0_20] : memref<1x1xf32, #tpu.memory_space<vmem>>, vector<1x1xf32>
    %cst_21 = arith.constant dense<0.000000e+00> : vector<1xf32>
    %55 = vector.multi_reduction <add>, %53, %cst_21 [1] : vector<1x256xf32> to vector<1xf32>
    %56 = vector.shape_cast %55 : vector<1xf32> to vector<1x1xf32>
    %57 = arith.addf %54, %56 : vector<1x1xf32>
    %c0_22 = arith.constant 0 : index
    %c0_23 = arith.constant 0 : index
    %58 = vector.load %arg5[%c0_22, %c0_23] : memref<1x1xf32, #tpu.memory_space<vmem>>, vector<1x1xf32>
    tpu.vector_store %arg5[%c0_22, %c0_23], %57 {strides = array<i32>} : memref<1x1xf32, #tpu.memory_space<vmem>>, vector<1x1xf32>,
    %c0_24 = arith.constant 0 : index
    %c0_25 = arith.constant 0 : index
    %59 = vector.load %arg6[%c0_24, %c0_25] : memref<4x1xf32, #tpu.memory_space<vmem>>, vector<4x1xf32>
    %cst_26 = arith.constant dense<0.000000e+00> : vector<4xf32>
    %60 = vector.multi_reduction <add>, %35, %cst_26 [1] : vector<4x256xf32> to vector<4xf32>
    %61 = vector.shape_cast %60 : vector<4xf32> to vector<4x1xf32>
    %62 = arith.addf %59, %61 : vector<4x1xf32>
    %c0_27 = arith.constant 0 : index
    %c0_28 = arith.constant 0 : index
    %63 = vector.load %arg6[%c0_27, %c0_28] : memref<4x1xf32, #tpu.memory_space<vmem>>, vector<4x1xf32>
    tpu.vector_store %arg6[%c0_27, %c0_28], %62 {strides = array<i32>} : memref<4x1xf32, #tpu.memory_space<vmem>>, vector<4x1xf32>,
    %c0_29 = arith.constant 0 : index
    %c0_30 = arith.constant 0 : index
    %64 = vector.load %arg7[%c0_29, %c0_30] : memref<4x1xf32, #tpu.memory_space<vmem>>, vector<4x1xf32>
    %cst_31 = arith.constant dense<0.000000e+00> : vector<4xf32>
    %65 = vector.multi_reduction <add>, %37, %cst_31 [1] : vector<4x256xf32> to vector<4xf32>
    %66 = vector.shape_cast %65 : vector<4xf32> to vector<4x1xf32>
    %67 = arith.addf %64, %66 : vector<4x1xf32>
    %c0_32 = arith.constant 0 : index
    %c0_33 = arith.constant 0 : index
    %68 = vector.load %arg7[%c0_32, %c0_33] : memref<4x1xf32, #tpu.memory_space<vmem>>, vector<4x1xf32>
    tpu.vector_store %arg7[%c0_32, %c0_33], %67 {strides = array<i32>} : memref<4x1xf32, #tpu.memory_space<vmem>>, vector<4x1xf32>,
    %c0_34 = arith.constant 0 : index
    %c0_35 = arith.constant 0 : index
    %69 = vector.load %arg8[%c0_34, %c0_35] : memref<4x1xf32, #tpu.memory_space<vmem>>, vector<4x1xf32>
    %cst_36 = arith.constant dense<0.000000e+00> : vector<4xf32>
    %70 = vector.multi_reduction <add>, %38, %cst_36 [1] : vector<4x256xf32> to vector<4xf32>
    %71 = vector.shape_cast %70 : vector<4xf32> to vector<4x1xf32>
    %72 = arith.addf %69, %71 : vector<4x1xf32>
    %c0_37 = arith.constant 0 : index
    %c0_38 = arith.constant 0 : index
    %73 = vector.load %arg8[%c0_37, %c0_38] : memref<4x1xf32, #tpu.memory_space<vmem>>, vector<4x1xf32>
    tpu.vector_store %arg8[%c0_37, %c0_38], %72 {strides = array<i32>} : memref<4x1xf32, #tpu.memory_space<vmem>>, vector<4x1xf32>,
    %c0_39 = arith.constant 0 : index
    %c0_40 = arith.constant 0 : index
    %74 = vector.load %arg9[%c0_39, %c0_40] : memref<4x1xf32, #tpu.memory_space<vmem>>, vector<4x1xf32>
    %cst_41 = arith.constant dense<0.000000e+00> : vector<4xf32>
    %75 = vector.multi_reduction <add>, %39, %cst_41 [1] : vector<4x256xf32> to vector<4xf32>
    %76 = vector.shape_cast %75 : vector<4xf32> to vector<4x1xf32>
    %77 = arith.addf %74, %76 : vector<4x1xf32>
    %c0_42 = arith.constant 0 : index
    %c0_43 = arith.constant 0 : index
    %78 = vector.load %arg9[%c0_42, %c0_43] : memref<4x1xf32, #tpu.memory_space<vmem>>, vector<4x1xf32>
    tpu.vector_store %arg9[%c0_42, %c0_43], %77 {strides = array<i32>} : memref<4x1xf32, #tpu.memory_space<vmem>>, vector<4x1xf32>,
    %c0_44 = arith.constant 0 : index
    %c0_45 = arith.constant 0 : index
    %79 = vector.load %arg10[%c0_44, %c0_45] : memref<4x1xf32, #tpu.memory_space<vmem>>, vector<4x1xf32>
    %cst_46 = arith.constant dense<0.000000e+00> : vector<4xf32>
    %80 = vector.multi_reduction <add>, %40, %cst_46 [1] : vector<4x256xf32> to vector<4xf32>
    %81 = vector.shape_cast %80 : vector<4xf32> to vector<4x1xf32>
    %82 = arith.addf %79, %81 : vector<4x1xf32>
    %c0_47 = arith.constant 0 : index
    %c0_48 = arith.constant 0 : index
    %83 = vector.load %arg10[%c0_47, %c0_48] : memref<4x1xf32, #tpu.memory_space<vmem>>, vector<4x1xf32>
    tpu.vector_store %arg10[%c0_47, %c0_48], %82 {strides = array<i32>} : memref<4x1xf32, #tpu.memory_space<vmem>>, vector<4x1xf32>,
    %84 = arith.extui %5 : i1 to i32
    %c0_i32_49 = arith.constant 0 : i32
    %85 = arith.cmpi ne, %84, %c0_i32_49 : i32
    scf.if %85 {
      %c0_50 = arith.constant 0 : index
      %c0_51 = arith.constant 0 : index
      %86 = vector.load %arg6[%c0_50, %c0_51] : memref<4x1xf32, #tpu.memory_space<vmem>>, vector<4x1xf32>
      %c0_52 = arith.constant 0 : index
      %c0_53 = arith.constant 0 : index
      %87 = vector.load %arg7[%c0_52, %c0_53] : memref<4x1xf32, #tpu.memory_space<vmem>>, vector<4x1xf32>
      %c0_54 = arith.constant 0 : index
      %c0_55 = arith.constant 0 : index
      %88 = vector.load %arg10[%c0_54, %c0_55] : memref<4x1xf32, #tpu.memory_space<vmem>>, vector<4x1xf32>
      %89 = arith.mulf %86, %87 : vector<4x1xf32>
      %cst_56 = arith.constant 0.001953125 : f32
      %90 = vector.broadcast %cst_56 : f32 to vector<4x1xf32>
      %91 = arith.mulf %89, %90 : vector<4x1xf32>
      %92 = arith.subf %88, %91 : vector<4x1xf32>
      %c0_57 = arith.constant 0 : index
      %c0_58 = arith.constant 0 : index
      %93 = vector.load %arg8[%c0_57, %c0_58] : memref<4x1xf32, #tpu.memory_space<vmem>>, vector<4x1xf32>
      %94 = arith.mulf %86, %86 : vector<4x1xf32>
      %cst_59 = arith.constant 0.001953125 : f32
      %95 = vector.broadcast %cst_59 : f32 to vector<4x1xf32>
      %96 = arith.mulf %94, %95 : vector<4x1xf32>
      %97 = arith.subf %93, %96 : vector<4x1xf32>
      %cst_60 = arith.constant 0.000000e+00 : f32
      %98 = vector.broadcast %cst_60 : f32 to vector<4x1xf32>
      %99 = arith.maximumf %97, %98 : vector<4x1xf32>
      %c0_61 = arith.constant 0 : index
      %c0_62 = arith.constant 0 : index
      %100 = vector.load %arg9[%c0_61, %c0_62] : memref<4x1xf32, #tpu.memory_space<vmem>>, vector<4x1xf32>
      %101 = arith.mulf %87, %87 : vector<4x1xf32>
      %cst_63 = arith.constant 0.001953125 : f32
      %102 = vector.broadcast %cst_63 : f32 to vector<4x1xf32>
      %103 = arith.mulf %101, %102 : vector<4x1xf32>
      %104 = arith.subf %100, %103 : vector<4x1xf32>
      %cst_64 = arith.constant 0.000000e+00 : f32
      %105 = vector.broadcast %cst_64 : f32 to vector<4x1xf32>
      %106 = arith.maximumf %104, %105 : vector<4x1xf32>
      %107 = math.sqrt %99 : vector<4x1xf32>
      %108 = math.sqrt %106 : vector<4x1xf32>
      %109 = arith.mulf %107, %108 : vector<4x1xf32>
      %cst_65 = arith.constant 9.99999993E-9 : f32
      %110 = vector.broadcast %cst_65 : f32 to vector<4x1xf32>
      %111 = arith.addf %109, %110 : vector<4x1xf32>
      %112 = arith.divf %92, %111 : vector<4x1xf32>
      %cst_66 = arith.constant dense<0.000000e+00> : vector<1xf32>
      %113 = vector.multi_reduction <add>, %112, %cst_66 [0] : vector<4x1xf32> to vector<1xf32>
      %114 = vector.shape_cast %113 : vector<1xf32> to vector<1x1xf32>
      %cst_67 = arith.constant 2.500000e-01 : f32
      %115 = vector.broadcast %cst_67 : f32 to vector<1x1xf32>
      %116 = arith.mulf %114, %115 : vector<1x1xf32>
      %cst_68 = arith.constant 1.000000e+00 : f32
      %117 = vector.broadcast %cst_68 : f32 to vector<1x1xf32>
      %118 = arith.subf %117, %116 : vector<1x1xf32>
      %c0_69 = arith.constant 0 : index
      %c0_70 = arith.constant 0 : index
      %119 = vector.load %arg5[%c0_69, %c0_70] : memref<1x1xf32, #tpu.memory_space<vmem>>, vector<1x1xf32>
      %cst_71 = arith.constant 0.001953125 : f32
      %120 = vector.broadcast %cst_71 : f32 to vector<1x1xf32>
      %121 = arith.mulf %119, %120 : vector<1x1xf32>
      %cst_72 = arith.constant 1.000000e+00 : f32
      %122 = vector.broadcast %cst_72 : f32 to vector<1x1xf32>
      %123 = arith.subf %122, %121 : vector<1x1xf32>
      %cst_73 = arith.constant 1.000000e+00 : f32
      %124 = vector.broadcast %cst_73 : f32 to vector<1x1xf32>
      %125 = arith.mulf %124, %123 : vector<1x1xf32>
      %cst_74 = arith.constant 1.000000e+00 : f32
      %126 = vector.broadcast %cst_74 : f32 to vector<1x1xf32>
      %127 = arith.mulf %126, %118 : vector<1x1xf32>
      %128 = arith.addf %125, %127 : vector<1x1xf32>
      %c0_75 = arith.constant 0 : index
      %c0_76 = arith.constant 0 : index
      %129 = vector.load %arg4[%c0_75, %c0_76] : memref<1x1xf32, #tpu.memory_space<vmem>>, vector<1x1xf32>
      tpu.vector_store %arg4[%c0_75, %c0_76], %128 {strides = array<i32>} : memref<1x1xf32, #tpu.memory_space<vmem>>, vector<1x1xf32>,
    } else {
    }
    return
  }
  func.func @transform_0(%arg0: i32, %arg1: i32) -> (i32, i32, i32) {
    %c0_i32 = arith.constant 0 : i32
    %c0_i32_0 = arith.constant 0 : i32
    return %arg0, %c0_i32, %arg1 : i32, i32, i32
  }
  func.func @transform_1(%arg0: i32, %arg1: i32) -> (i32, i32, i32) {
    %c0_i32 = arith.constant 0 : i32
    %c0_i32_0 = arith.constant 0 : i32
    return %arg0, %c0_i32, %arg1 : i32, i32, i32
  }
  func.func @transform_2(%arg0: i32, %arg1: i32) -> (i32, i32) {
    %c0_i32 = arith.constant 0 : i32
    %c0_i32_0 = arith.constant 0 : i32
    %c0_i32_1 = arith.constant 0 : i32
    return %c0_i32, %c0_i32_0 : i32, i32
  }
}

</mosaic_0001>

<llo_original>
// kernel: tpu_custom_call.1
$region0: #{tpu_custom_call.1}
  #allocation0 [shape = 'u32[]', space=smem, size = 0x4, offset = 0x4, fixed_abs, tag = 'smem constant byte address 0x4 - core index']
  #allocation1 [shape = 'u32[144,128]{1,0:T(1,128)}', space=vmem, size = 0x12000, scoped, tag = 'internal scratch']
  #allocation2 [shape = 'f32[1,1]{1,0:T(1,128)}', space=vmem, size = 0x200, scoped, tag = 'scratch operand']
  #allocation3 [shape = 'f32[4,1]{1,0:T(4,128)}', space=vmem, size = 0x800, scoped, tag = 'scratch operand']
  #allocation4 [shape = 'f32[4,1]{1,0:T(4,128)}', space=vmem, size = 0x800, scoped, tag = 'scratch operand']
  #allocation5 [shape = 'f32[4,1]{1,0:T(4,128)}', space=vmem, size = 0x800, scoped, tag = 'scratch operand']
  #allocation6 [shape = 'f32[4,1]{1,0:T(4,128)}', space=vmem, size = 0x800, scoped, tag = 'scratch operand']
  #allocation7 [shape = 'f32[4,1]{1,0:T(4,128)}', space=vmem, size = 0x800, scoped, tag = 'scratch operand']
  %s0 = inlined_call_operand.hbm [shape: f32[2,4,256], index: 0, kind: input, shape index: {}]
  %s1 = inlined_call_operand.hbm [shape: f32[2,4,256], index: 1, kind: input, shape index: {}]
  %s2 = inlined_call_operand.hbm [shape: f32[1,1], index: 2, kind: output, shape index: {}]
  %s3 = sld [smem:[#allocation0]]
  $region57: #{tpu_custom_call.1} parent=0
    _
  %s5 = ssub.s32 1, %s3
  %s6 = scalar_select 0, %s5, %s3
  $region1: #{tpu_custom_call.1} parent=0
    #allocation8 [shape = 'u8[8192]{0}', space=vmem, size = 0x2000, scoped, tag = 'input window, operand 0']
    #allocation9 [shape = 's32[2]{0}', space=sflag, size = 0x8, scoped, tag = 'scoped memory for tpu_custom_call.1']
    #allocation10 [shape = 's32[2]{0}', space=sflag, size = 0x8, scoped, tag = 'scoped memory for tpu_custom_call.1']
    #allocation11 [shape = 'u8[8192]{0}', space=vmem, size = 0x2000, scoped, tag = 'input window, operand 1']
    #allocation12 [shape = 's32[2]{0}', space=sflag, size = 0x8, scoped, tag = 'scoped memory for tpu_custom_call.1']
    #allocation13 [shape = 'u8[512]{0}', space=vmem, size = 0x400, scoped, tag = 'output window, operand 0, single buffered']
    %7 = vsyncpa [#allocation9], 0
    %s8 = scalar_lea.sflag [#allocation9], 1
    %9 = vsyncpa %s8, 0
    %10 = vsyncpa [#allocation12], 0
    %s11 = scalar_lea.sflag [#allocation12], 1
    %12 = vsyncpa %s11, 0
    %13 = vsyncpa [#allocation10], 0
    loop: start=0, step=1, limit=4
    $region2: #{tpu_custom_call.1} parent=1 // loop_pre_header
      _
    $region3: #{tpu_custom_call.1} parent=1 // loop_header
      %s15 = sphi 0, %s19
      %p16 = scmp.ge.s32.totalorder %s15, 4
      %s22 = sphi 0, %s34
      %s23 = sphi 0, %s30
      %s24 = sphi 0, %s22
      %s25 = sphi 0, %s23
      %s26 = sphi 0, %s24
      %s27 = sphi 0, %s25
      %s39 = sphi 0, %s41
      %s42 = sphi 0, %s39
      %s43 = sphi 0, %s42
      %s59 = sphi 0, %s43
      %s67 = sphi 0, %s69
      %s70 = sphi 0, %s67
      %s71 = sphi 0, %s70
      %s87 = sphi 0, %s71
      %s91 = sphi 0, %s91
      %s93 = sphi 0, %s91
      %s94 = sphi 0, %s93
      %s108 = sphi 0, %s94
    $region4: #{tpu_custom_call.1} parent=1 // loop_header_branch
      %18 = sbr.rel (%p16) target = $region8
    $region5: #{tpu_custom_call.1} parent=1 // loop_body
      %s20 = ssub.s32 %s15, 1
      %s21 = ssub.s32 %s15, 2
      %s28 = sadd.s32 1, %s23
      %p29 = scmp.ge.s32.totalorder %s28, 1
      %s30 = scalar_select %p29, 0, %s28
      %s31 = sadd.s32 1, %s22
      %s32 = scalar_select %p29, %s31, %s22
      %p33 = scmp.ge.s32.totalorder %s32, 2
      %s34 = scalar_select %p33, 0, %s32
      %s35 = ssub.s32 %s22, %s34
      %s36 = ssub.s32 %s23, %s30
      %s37 = sor.u32 %s35, %s36
      %p38 = scmp.eq.s32.totalorder %s37, 0
      %s40 = sadd.s32 %s39, 1
      %s41 = scalar_select %p38, %s39, %s40
      %p44 = pneg %p38
      %p45 = scmp.eq.s32.totalorder %s15, 1
      %p46 = por %p44, %p45
      %p47 = scmp.ne.s32.totalorder %s39, %s42
      %p48 = scmp.eq.s32.totalorder %s15, 0
      %p49 = por %p47, %p48
      %p50 = scmp.ne.s32.totalorder %s39, %s42
      %p51 = scmp.eq.s32.totalorder %s20, 1
      %p52 = por %p50, %p51
      %p53 = scmp.ne.s32.totalorder %s42, %s43
      %p54 = scmp.eq.s32.totalorder %s20, 0
      %p55 = por %p53, %p54
      %p56 = scmp.ne.s32.totalorder %s42, %s43
      %p57 = scmp.eq.s32.totalorder %s21, 1
      %p58 = por %p56, %p57
      %p60 = scmp.ne.s32.totalorder %s43, %s59
      %p61 = scmp.eq.s32.totalorder %s21, 0
      %p62 = por %p60, %p61
      %s63 = ssub.s32 %s22, %s34
      %s64 = ssub.s32 %s23, %s30
      %s65 = sor.u32 %s63, %s64
      %p66 = scmp.eq.s32.totalorder %s65, 0
      %s68 = sadd.s32 %s67, 1
      %s69 = scalar_select %p66, %s67, %s68
      %p72 = pneg %p66
      %p73 = scmp.eq.s32.totalorder %s15, 1
      %p74 = por %p72, %p73
      %p75 = scmp.ne.s32.totalorder %s67, %s70
      %p76 = scmp.eq.s32.totalorder %s15, 0
      %p77 = por %p75, %p76
      %p78 = scmp.ne.s32.totalorder %s67, %s70
      %p79 = scmp.eq.s32.totalorder %s20, 1
      %p80 = por %p78, %p79
      %p81 = scmp.ne.s32.totalorder %s70, %s71
      %p82 = scmp.eq.s32.totalorder %s20, 0
      %p83 = por %p81, %p82
      %p84 = scmp.ne.s32.totalorder %s70, %s71
      %p85 = scmp.eq.s32.totalorder %s21, 1
      %p86 = por %p84, %p85
      %p88 = scmp.ne.s32.totalorder %s71, %s87
      %p89 = scmp.eq.s32.totalorder %s21, 0
      %p90 = por %p88, %p89
      %s92 = sadd.s32 %s91, 1
      %p95 = scmp.eq.s32.totalorder %s15, 1
      %p96 = scmp.ne.s32.totalorder %s91, %s93
      %p97 = scmp.eq.s32.totalorder %s15, 0
      %p98 = por %p96, %p97
      %p99 = scmp.ne.s32.totalorder %s91, %s93
      %p100 = scmp.eq.s32.totalorder %s20, 1
      %p101 = por %p99, %p100
      %p102 = scmp.ne.s32.totalorder %s93, %s94
      %p103 = scmp.eq.s32.totalorder %s20, 0
      %p104 = por %p102, %p103
      %p105 = scmp.ne.s32.totalorder %s93, %s94
      %p106 = scmp.eq.s32.totalorder %s21, 1
      %p107 = por %p105, %p106
      %p109 = scmp.ne.s32.totalorder %s94, %s108
      %p110 = scmp.eq.s32.totalorder %s21, 0
      %p111 = por %p109, %p110
      %p112 = scmp.le.s32.totalorder 1, %s15
      %p113 = scmp.lt.s32.totalorder %s15, 3
      %p114 = pnand %p112, %p113
      %p115 = pneg %p114
      // Predicated region
      $region9: #{tpu_custom_call.1} parent=5 // pred_check
        _
      $region10: #{tpu_custom_call.1} parent=5 // pred_check_branch
        %117 = sbr.rel (%p114) target = $region12
      $region11: #{tpu_custom_call.1} parent=5 // pred_region
        %s118 = ssub.s32 %s15, 1
      $region12: #{tpu_custom_call.1} parent=5 // pred_fallthru
        _
      %p119 = scmp.lt.s32.totalorder %s15, 2
      // Predicated region
      $region13: #{tpu_custom_call.1} parent=5 // pred_check
        %p120 = pneg %p119
      $region14: #{tpu_custom_call.1} parent=5 // pred_check_branch
        %122 = sbr.rel (%p120) target = $region16
      $region15: #{tpu_custom_call.1} parent=5 // pred_region
        // Predicated region
        $region17: #{tpu_custom_call.1} parent=15 // pred_check
          %p123 = pneg %p49
        $region18: #{tpu_custom_call.1} parent=15 // pred_check_branch
          %125 = sbr.rel (%p123) target = $region20
        $region19: #{tpu_custom_call.1} parent=15 // pred_region
          %s126 = sand.u32 %s39, 1
          %s127 = scalar_lea.sflag [#allocation9], %s126
          %s128 = sand.u32 %s39, 1
          %s129 = smul.addr %s128, 8
          %s130 = scalar_lea.vmem [#allocation8], %s129
          %s131 = smul.u32 2, %s23
          %s133 = ssub.s32 128, 128
          %134 = vsyncadd %s127, %s133
          %s135 = smul.addr %s22, 2
          %s136 = sadd.s32 %s131, %s135
          %s137 = smul.addr %s136, 64
          %s138 = scalar_lea.hbm %s0, %s137
          %s140 = sshll.u32 %s130, 4
          %s141 = int_to_ptr.vmem [resolvable:$true] %s140
          %143 = dma.hbm_to_vmem [thread:$0]  %s138, 128, %s141, %s127
        $region20: #{tpu_custom_call.1} parent=15 // pred_fallthru
          _
        // Predicated region
        $region21: #{tpu_custom_call.1} parent=15 // pred_check
          %p144 = pneg %p77
        $region22: #{tpu_custom_call.1} parent=15 // pred_check_branch
          %146 = sbr.rel (%p144) target = $region24
        $region23: #{tpu_custom_call.1} parent=15 // pred_region
          %s147 = sand.u32 %s67, 1
          %s148 = scalar_lea.sflag [#allocation12], %s147
          %s149 = sand.u32 %s67, 1
          %s150 = smul.addr %s149, 8
          %s151 = scalar_lea.vmem [#allocation11], %s150
          %s152 = smul.u32 2, %s23
          %s154 = ssub.s32 128, 128
          %155 = vsyncadd %s148, %s154
          %s156 = smul.addr %s22, 2
          %s157 = sadd.s32 %s152, %s156
          %s158 = smul.addr %s157, 64
          %s159 = scalar_lea.hbm %s1, %s158
          %s161 = sshll.u32 %s151, 4
          %s162 = int_to_ptr.vmem [resolvable:$true] %s161
          %164 = dma.hbm_to_vmem [thread:$0]  %s159, 128, %s162, %s148
        $region24: #{tpu_custom_call.1} parent=15 // pred_fallthru
          _
      $region16: #{tpu_custom_call.1} parent=5 // pred_fallthru
        _
      %p165 = scmp.le.s32.totalorder 1, %s15
      %p166 = scmp.lt.s32.totalorder %s15, 3
      %p167 = pnand %p165, %p166
      %p168 = pneg %p167
      // Predicated region
      $region25: #{tpu_custom_call.1} parent=5 // pred_check
        _
      $region26: #{tpu_custom_call.1} parent=5 // pred_check_branch
        %170 = sbr.rel (%p167) target = $region28
      $region27: #{tpu_custom_call.1} parent=5 // pred_region
        %s171 = ssub.s32 %s15, 1
        %s172 = sand.u32 %s42, 1
        %s173 = scalar_lea.sflag [#allocation9], %s172
        %s174 = sand.u32 %s42, 1
        %s175 = smul.addr %s174, 8
        %s176 = scalar_lea.vmem [#allocation8], %s175
        // Predicated region
        $region29: #{tpu_custom_call.1} parent=27 // pred_check
          %p177 = pneg %p55
        $region30: #{tpu_custom_call.1} parent=27 // pred_check_branch
          %179 = sbr.rel (%p177) target = $region32
        $region31: #{tpu_custom_call.1} parent=27 // pred_region
          %180 = dma.done %s173, 128
        $region32: #{tpu_custom_call.1} parent=27 // pred_fallthru
          _
        %s181 = sand.u32 %s70, 1
        %s182 = scalar_lea.sflag [#allocation12], %s181
        %s183 = sand.u32 %s70, 1
        %s184 = smul.addr %s183, 8
        %s185 = scalar_lea.vmem [#allocation11], %s184
        // Predicated region
        $region33: #{tpu_custom_call.1} parent=27 // pred_check
          %p186 = pneg %p83
        $region34: #{tpu_custom_call.1} parent=27 // pred_check_branch
          %188 = sbr.rel (%p186) target = $region36
        $region35: #{tpu_custom_call.1} parent=27 // pred_region
          %189 = dma.done %s182, 128
        $region36: #{tpu_custom_call.1} parent=27 // pred_fallthru
          _
        %s190 = sand.u32 %s42, 1
        %s191 = scalar_lea.sflag [#allocation9], %s190
        %s192 = sand.u32 %s42, 1
        %s193 = smul.addr %s192, 8
        %s194 = scalar_lea.vmem [#allocation8], %s193
        %p195 = pneg %p55
        %p196 = pneg %p52
        %s197 = sand.u32 %s70, 1
        %s198 = scalar_lea.sflag [#allocation12], %s197
        %s199 = sand.u32 %s70, 1
        %s200 = smul.addr %s199, 8
        %s201 = scalar_lea.vmem [#allocation11], %s200
        %p202 = pneg %p83
        %p203 = pneg %p80
        %p204 = pneg %p104
        %p205 = pneg %p101
        %s206 = smul.u32 2, %s25
        %s207 = smul.u32 2, %s25
        %p208 = scmp.eq.s32.totalorder %s24, 0
        %p209 = scmp.eq.s32.totalorder %s25, 0
        %p210 = pnand %p208, %p209
        %p211 = pneg %p210
        %p212 = scmp.eq.s32.totalorder %s24, 1
        %p213 = pnand %p212, %p209
        %p214 = pneg %p213
        // Predicated region
        $region37: #{tpu_custom_call.1} parent=27 // pred_check
          _
        $region38: #{tpu_custom_call.1} parent=27 // pred_check_branch
          %216 = sbr.rel (%p210) target = $region40
        $region39: #{tpu_custom_call.1} parent=27 // pred_region
          %vm217 = vcmask 0
          %218 = vst.msk [vmem:[#allocation2] sm:$0x1] %vm217, 0.0
          %vm219 = vcmask 3072
          %220 = vst.msk [vmem:[#allocation3] sm:$0xf] %vm219, 0.0
          %221 = vst.msk [vmem:[#allocation4] sm:$0xf] %vm219, 0.0
          %222 = vst.msk [vmem:[#allocation5] sm:$0xf] %vm219, 0.0
          %223 = vst.msk [vmem:[#allocation6] sm:$0xf] %vm219, 0.0
          %224 = vst.msk [vmem:[#allocation7] sm:$0xf] %vm219, 0.0
        $region40: #{tpu_custom_call.1} parent=27 // pred_fallthru
          _
        %v225 = vld [vmem:[%s176] sm:$0xff]
        %v226 = vld [vmem:[%s185] sm:$0xff]
        %v228 = vcombine.high %v225, %v225
        %vm230 = vcmask 1043456
        %v231 = vsel %vm230, %v225, -inf
        %v232 = vrot.slane %v231, 4
        %v233 = vmax.f32 %v231, %v232
        %v234 = vrot.slane %v233, 2
        %v235 = vmax.f32 %v233, %v234
        %v236 = vrot.slane %v235, 1
        %v237 = vmax.f32 %v235, %v236
        %v238 = vsel %vm230, %v228, -inf
        %v239 = vrot.slane %v238, 4
        %v240 = vmax.f32 %v238, %v239
        %v241 = vrot.slane %v240, 2
        %v242 = vmax.f32 %v240, %v241
        %v243 = vrot.slane %v242, 1
        %v244 = vmax.f32 %v242, %v243
        %v247 = vcombine.low %v237, %v244
        %v249 = vsub.f32 %v225, %v247
        %v250 = vmul.f32 %v249, 1.442695
        %v251 = vpow.pop %v250
        %v253 = vcombine.high %v226, %v226
        %v255 = vsel %vm230, %v226, -inf
        %v256 = vrot.slane %v255, 4
        %v257 = vmax.f32 %v255, %v256
        %v258 = vrot.slane %v257, 2
        %v259 = vmax.f32 %v257, %v258
        %v260 = vrot.slane %v259, 1
        %v261 = vmax.f32 %v259, %v260
        %v262 = vsel %vm230, %v253, -inf
        %v263 = vrot.slane %v262, 4
        %v264 = vmax.f32 %v262, %v263
        %v265 = vrot.slane %v264, 2
        %v266 = vmax.f32 %v264, %v265
        %v267 = vrot.slane %v266, 1
        %v268 = vmax.f32 %v266, %v267
        %v271 = vcombine.low %v261, %v268
        %v273 = vsub.f32 %v226, %v271
        %v274 = vmul.f32 %v273, 1.442695
        %v275 = vpow.pop %v274
        %v277 = vcombine.high %v251, %v251
        %v279 = vsel %vm230, %v251, 0.0
        %v280 = vrot.slane %v279, 4
        %v281 = vadd.f32 %v279, %v280
        %v282 = vrot.slane %v281, 2
        %v283 = vadd.f32 %v281, %v282
        %v284 = vrot.slane %v283, 1
        %v285 = vadd.f32 %v283, %v284
        %v286 = vsel %vm230, %v277, 0.0
        %v287 = vrot.slane %v286, 4
        %v288 = vadd.f32 %v286, %v287
        %v289 = vrot.slane %v288, 2
        %v290 = vadd.f32 %v288, %v289
        %v291 = vrot.slane %v290, 1
        %v292 = vadd.f32 %v290, %v291
        %v293 = vrcp.pop %v285
        %v294 = vmul.f32 1.0, %v293
        %v295 = vrcp.pop %v292
        %v296 = vmul.f32 1.0, %v295
        %v299 = vcombine.low %v294, %v296
        %v301 = vmul.f32 %v251, %v299
        %v303 = vcombine.high %v275, %v275
        %v305 = vsel %vm230, %v275, 0.0
        %v306 = vrot.slane %v305, 4
        %v307 = vadd.f32 %v305, %v306
        %v308 = vrot.slane %v307, 2
        %v309 = vadd.f32 %v307, %v308
        %v310 = vrot.slane %v309, 1
        %v311 = vadd.f32 %v309, %v310
        %v312 = vsel %vm230, %v303, 0.0
        %v313 = vrot.slane %v312, 4
        %v314 = vadd.f32 %v312, %v313
        %v315 = vrot.slane %v314, 2
        %v316 = vadd.f32 %v314, %v315
        %v317 = vrot.slane %v316, 1
        %v318 = vadd.f32 %v316, %v317
        %v319 = vrcp.pop %v311
        %v320 = vmul.f32 1.0, %v319
        %v321 = vrcp.pop %v318
        %v322 = vmul.f32 1.0, %v321
        %v325 = vcombine.low %v320, %v322
        %v327 = vmul.f32 %v275, %v325
        %v328 = vsub.f32 %v301, 0.25
        %v329 = vsub.f32 %v327, 0.25
        %v330 = vmul.f32 %v328, %v328
        %v331 = vmul.f32 %v329, %v329
        %v332 = vmul.f32 %v328, %v329
        %v334 = vcombine.high %v332, %v332
        %v336 = vsel %vm230, %v332, 0.0
        %v337 = vrot.slane %v336, 4
        %v338 = vadd.f32 %v336, %v337
        %v339 = vrot.slane %v338, 2
        %v340 = vadd.f32 %v338, %v339
        %v341 = vrot.slane %v340, 1
        %v342 = vadd.f32 %v340, %v341
        %v343 = vsel %vm230, %v334, 0.0
        %v344 = vrot.slane %v343, 4
        %v345 = vadd.f32 %v343, %v344
        %v346 = vrot.slane %v345, 2
        %v347 = vadd.f32 %v345, %v346
        %v348 = vrot.slane %v347, 1
        %v349 = vadd.f32 %v347, %v348
        %v351 = vcombine.high %v330, %v330
        %v353 = vsel %vm230, %v330, 0.0
        %v354 = vrot.slane %v353, 4
        %v355 = vadd.f32 %v353, %v354
        %v356 = vrot.slane %v355, 2
        %v357 = vadd.f32 %v355, %v356
        %v358 = vrot.slane %v357, 1
        %v359 = vadd.f32 %v357, %v358
        %v360 = vsel %vm230, %v351, 0.0
        %v361 = vrot.slane %v360, 4
        %v362 = vadd.f32 %v360, %v361
        %v363 = vrot.slane %v362, 2
        %v364 = vadd.f32 %v362, %v363
        %v365 = vrot.slane %v364, 1
        %v366 = vadd.f32 %v364, %v365
        %v368 = vcombine.high %v331, %v331
        %v370 = vsel %vm230, %v331, 0.0
        %v371 = vrot.slane %v370, 4
        %v372 = vadd.f32 %v370, %v371
        %v373 = vrot.slane %v372, 2
        %v374 = vadd.f32 %v372, %v373
        %v375 = vrot.slane %v374, 1
        %v376 = vadd.f32 %v374, %v375
        %v377 = vsel %vm230, %v368, 0.0
        %v378 = vrot.slane %v377, 4
        %v379 = vadd.f32 %v377, %v378
        %v380 = vrot.slane %v379, 2
        %v381 = vadd.f32 %v379, %v380
        %v382 = vrot.slane %v381, 1
        %v383 = vadd.f32 %v381, %v382
        %v384 = vrsqrt.pop %v359
        %v385 = vmul.f32 %v359, %v384
        %vm386 = vcmp.eq.f32.partialorder %v359, inf
        %v387 = vsel %vm386, %v359, %v385
        %vm388 = vcmp.eq.f32.partialorder %v359, 0.0
        %v389 = vand.u32 %v359, 2147483648
        %v390 = vsel %vm388, %v389, %v387
        %v391 = vrsqrt.pop %v366
        %v392 = vmul.f32 %v366, %v391
        %vm393 = vcmp.eq.f32.partialorder %v366, inf
        %v394 = vsel %vm393, %v366, %v392
        %vm395 = vcmp.eq.f32.partialorder %v366, 0.0
        %v396 = vand.u32 %v366, 2147483648
        %v397 = vsel %vm395, %v396, %v394
        %v398 = vrsqrt.pop %v376
        %v399 = vmul.f32 %v376, %v398
        %vm400 = vcmp.eq.f32.partialorder %v376, inf
        %v401 = vsel %vm400, %v376, %v399
        %vm402 = vcmp.eq.f32.partialorder %v376, 0.0
        %v403 = vand.u32 %v376, 2147483648
        %v404 = vsel %vm402, %v403, %v401
        %v405 = vrsqrt.pop %v383
        %v406 = vmul.f32 %v383, %v405
        %vm407 = vcmp.eq.f32.partialorder %v383, inf
        %v408 = vsel %vm407, %v383, %v406
        %vm409 = vcmp.eq.f32.partialorder %v383, 0.0
        %v410 = vand.u32 %v383, 2147483648
        %v411 = vsel %vm409, %v410, %v408
        %v412 = vmul.f32 %v390, %v404
        %v413 = vmul.f32 %v397, %v411
        %v414 = vadd.f32 %v412, 1e-08
        %v415 = vadd.f32 %v413, 1e-08
        %v416 = vrcp.pop %v414
        %v417 = vrcp.pop %v415
        %v418 = vmul.f32 %v342, %v416
        %v419 = vmul.f32 %v349, %v417
        %v420 = vld [vmem:[#allocation2] sm:$0x1]
        %v421 = vadd.f32 %v418, %v419
        %422 = vadd.xlane.f32.xlu0 %v421
        %v423 = vpop.xlane.xlu0 %422
        %v424 = vadd.f32 %v420, %v423
        %vm425 = vcmask 0
        %426 = vst.msk [vmem:[#allocation2] sm:$0x1] %vm425, %v424
        %v427 = vld [vmem:[#allocation3] sm:$0xf]
        %v429 = vcombine.high %v328, %v328
        %v431 = vsel %vm230, %v328, 0.0
        %v432 = vsel %vm230, %v429, 0.0
        %v433 = vadd.f32 %v431, %v432
        %434 = vadd.xlane.f32.xlu0 %v433
        %v435 = vpop.xlane.xlu0 %434
        %v436 = vadd.f32 %v427, %v435
        %vm437 = vcmask 3072
        %438 = vst.msk [vmem:[#allocation3] sm:$0xf] %vm437, %v436
        %v439 = vld [vmem:[#allocation4] sm:$0xf]
        %v441 = vcombine.high %v329, %v329
        %v443 = vsel %vm230, %v329, 0.0
        %v444 = vsel %vm230, %v441, 0.0
        %v445 = vadd.f32 %v443, %v444
        %446 = vadd.xlane.f32.xlu0 %v445
        %v447 = vpop.xlane.xlu0 %446
        %v448 = vadd.f32 %v439, %v447
        %449 = vst.msk [vmem:[#allocation4] sm:$0xf] %vm437, %v448
        %v450 = vld [vmem:[#allocation5] sm:$0xf]
        %v451 = vadd.f32 %v353, %v360
        %452 = vadd.xlane.f32.xlu0 %v451
        %v453 = vpop.xlane.xlu0 %452
        %v454 = vadd.f32 %v450, %v453
        %455 = vst.msk [vmem:[#allocation5] sm:$0xf] %vm437, %v454
        %v456 = vld [vmem:[#allocation6] sm:$0xf]
        %v457 = vadd.f32 %v370, %v377
        %458 = vadd.xlane.f32.xlu0 %v457
        %v459 = vpop.xlane.xlu0 %458
        %v460 = vadd.f32 %v456, %v459
        %461 = vst.msk [vmem:[#allocation6] sm:$0xf] %vm437, %v460
        %v462 = vld [vmem:[#allocation7] sm:$0xf]
        %v463 = vadd.f32 %v336, %v343
        %464 = vadd.xlane.f32.xlu0 %v463
        %v465 = vpop.xlane.xlu0 %464
        %v466 = vadd.f32 %v462, %v465
        %467 = vst.msk [vmem:[#allocation7] sm:$0xf] %vm437, %v466
        // Predicated region
        $region41: #{tpu_custom_call.1} parent=27 // pred_check
          _
        $region42: #{tpu_custom_call.1} parent=27 // pred_check_branch
          %469 = sbr.rel (%p213) target = $region44
        $region43: #{tpu_custom_call.1} parent=27 // pred_region
          %v470 = vld [vmem:[#allocation3] sm:$0xf]
          %v471 = vld [vmem:[#allocation4] sm:$0xf]
          %v472 = vld [vmem:[#allocation7] sm:$0xf]
          %v473 = vmul.f32 %v470, %v471
          %v474 = vmul.f32 %v473, 0.001953125
          %v475 = vsub.f32 %v472, %v474
          %v476 = vld [vmem:[#allocation5] sm:$0xf]
          %v477 = vmul.f32 %v470, %v470
          %v478 = vmul.f32 %v477, 0.001953125
          %v479 = vsub.f32 %v476, %v478
          %v480 = vmax.f32 %v479, 0.0
          %v481 = vld [vmem:[#allocation6] sm:$0xf]
          %v482 = vmul.f32 %v471, %v471
          %v483 = vmul.f32 %v482, 0.001953125
          %v484 = vsub.f32 %v481, %v483
          %v485 = vmax.f32 %v484, 0.0
          %v486 = vrsqrt.pop %v480
          %v487 = vmul.f32 %v480, %v486
          %vm488 = vcmp.eq.f32.partialorder %v480, inf
          %v489 = vsel %vm488, %v480, %v487
          %vm490 = vcmp.eq.f32.partialorder %v480, 0.0
          %v491 = vand.u32 %v480, 2147483648
          %v492 = vsel %vm490, %v491, %v489
          %v493 = vrsqrt.pop %v485
          %v494 = vmul.f32 %v485, %v493
          %vm495 = vcmp.eq.f32.partialorder %v485, inf
          %v496 = vsel %vm495, %v485, %v494
          %vm497 = vcmp.eq.f32.partialorder %v485, 0.0
          %v498 = vand.u32 %v485, 2147483648
          %v499 = vsel %vm497, %v498, %v496
          %v500 = vmul.f32 %v492, %v499
          %v501 = vadd.f32 %v500, 1e-08
          %v502 = vrcp.pop %v501
          %v503 = vmul.f32 %v475, %v502
          %v504 = vsel %vm437, %v503, 0.0
          %v505 = vrot.slane %v504, 4
          %v506 = vadd.f32 %v504, %v505
          %v507 = vrot.slane %v506, 2
          %v508 = vadd.f32 %v506, %v507
          %v509 = vrot.slane %v508, 1
          %v510 = vadd.f32 %v508, %v509
          %v511 = vmul.f32 %v510, 0.25
          %v512 = vsub.f32 1.0, %v511
          %v513 = vld [vmem:[#allocation2] sm:$0x1]
          %v514 = vmul.f32 %v513, 0.001953125
          %v515 = vsub.f32 1.0, %v514
          %v516 = vadd.f32 %v515, %v512
          %517 = vst.msk [vmem:[#allocation13] sm:$0x1] %vm425, %v516
        $region44: #{tpu_custom_call.1} parent=27 // pred_fallthru
          _
        // Predicated region
        $region45: #{tpu_custom_call.1} parent=27 // pred_check
          %p518 = pneg %p101
        $region46: #{tpu_custom_call.1} parent=27 // pred_check_branch
          %520 = sbr.rel (%p518) target = $region48
        $region47: #{tpu_custom_call.1} parent=27 // pred_region
          %s522 = ssub.s32 16, 16
          %523 = vsyncadd [#allocation10], %s522
          %s525 = sshll.u32 [#allocation13], 4
          %s526 = int_to_ptr.vmem [resolvable:$true] %s525
          %528 = dma.vmem_to_hbm [thread:$0]  %s526, 16, %s2, [#allocation10]
        $region48: #{tpu_custom_call.1} parent=27 // pred_fallthru
          _
        // Predicated region
        $region49: #{tpu_custom_call.1} parent=27 // pred_check
          %p529 = pneg %p101
        $region50: #{tpu_custom_call.1} parent=27 // pred_check_branch
          %531 = sbr.rel (%p529) target = $region52
        $region51: #{tpu_custom_call.1} parent=27 // pred_region
          %532 = dma.done [#allocation10], 16
        $region52: #{tpu_custom_call.1} parent=27 // pred_fallthru
          _
      $region28: #{tpu_custom_call.1} parent=5 // pred_fallthru
        _
      %p533 = scmp.le.s32.totalorder 2, %s15
      // Predicated region
      $region53: #{tpu_custom_call.1} parent=5 // pred_check
        %p534 = pneg %p533
      $region54: #{tpu_custom_call.1} parent=5 // pred_check_branch
        %536 = sbr.rel (%p534) target = $region56
      $region55: #{tpu_custom_call.1} parent=5 // pred_region
        %s537 = ssub.s32 %s15, 2
      $region56: #{tpu_custom_call.1} parent=5 // pred_fallthru
        _
    $region6: #{tpu_custom_call.1} parent=1 // loop_footer
      %s19 = sadd.s32 1, %s15
    $region7: #{tpu_custom_call.1} parent=1 // loop_footer_branch
      %14 = sbr.rel target = $region3
    $region8: #{tpu_custom_call.1} parent=1 // loop_exit
      _
    %538 = vsyncpa [#allocation9], 1
    %s539 = scalar_lea.sflag [#allocation9], 1
    %540 = vsyncpa %s539, 1
    %541 = vsyncpa [#allocation12], 1
    %s542 = scalar_lea.sflag [#allocation12], 1
    %543 = vsyncpa %s542, 1
    %544 = vsyncpa [#allocation10], 1
    %s545 = scalar_lea.sflag [#allocation10], 1
    %546 = vsyncpa %s545, 1

</llo_original>
